<compile_context>
chip_gen: v6e
topology: v6e:2x2x1
jax: 0.10.0
libtpu: 0.0.40
codegen_flags: <defaults>
</compile_context>

<pallas_src>
import functools

import numpy as np
import jax
import jax.numpy as jnp
from jax.experimental import pallas as pl
from jax.experimental.pallas import tpu as pltpu


# JPEG luminance quantization table (transposed, as in the DiffJPEG reference).
_Y_TABLE_NP = np.array(
    [[16, 11, 10, 16, 24, 40, 51, 61],
     [12, 12, 14, 19, 26, 58, 60, 55],
     [14, 13, 16, 24, 40, 57, 69, 56],
     [14, 17, 22, 29, 51, 87, 80, 62],
     [18, 22, 37, 56, 68, 109, 103, 77],
     [24, 35, 55, 64, 81, 104, 113, 92],
     [49, 64, 78, 87, 103, 121, 120, 101],
     [72, 92, 95, 98, 112, 100, 103, 99]], dtype=np.float32).T


def _y_quantize_kernel(img_ref, q_ref, out_ref, *, rounding, exact_div):
    # img_ref: (block_rows, lane) f32 -- lane-dense slab of flattened 8x8 blocks
    # q_ref:   (1, lane)          f32 -- reciprocal (or divisor) table, period
    #                                    64, factor folded in at trace time
    x = img_ref[...]
    if exact_div:
        scaled = x / q_ref[...]            # bit-parity with the torch divide
    else:
        scaled = x * q_ref[...]            # single vmul -> stays HBM-bound
    r = jnp.round(scaled)                  # torch.round == round-half-to-even
    if rounding == "diff":
        # DiffJPEG differentiable rounding: round(x) + (x - round(x))**3
        d = scaled - r
        r = r + d * d * d
    out_ref[...] = r


_TARGET_BLOCK_BYTES = 8 * 1024 * 1024    # per input block (2 bufs x (in+out) = 32 MiB)
_MIN_BLOCK_BYTES = 1 * 1024 * 1024       # never shrink blocks below this for step count
_MIN_GRID_STEPS = 8                      # >= 4 steps per TensorCore on v7x megacore
_MAX_LANE = 8192
_VMEM_LIMIT_BYTES = 48 * 1024 * 1024     # fits v7x's 64 MiB/TC; plenty on v5e/v6e


def _pick_lane(n_elems):
    """Widest lane count that divides n_elems and is a multiple of 64 (so the
    8x8 table tiles exactly), preferring multiples of 128 (unmasked vst),
    capped at _MAX_LANE. n_elems is always a multiple of 64."""
    m = n_elems // 64
    best_even, best_any = 0, 0
    d = 1
    while d * d <= m:
        if m % d == 0:
            for dd in (d, m // d):
                lane = 64 * dd
                if lane <= _MAX_LANE:
                    best_any = max(best_any, lane)
                    if dd % 2 == 0:
                        best_even = max(best_even, lane)
        d += 1
    return best_even if best_even else best_any


def _pick_block_rows(slab_rows, lane):
    bytes_per_row = lane * 4
    target_rows = max(8, _TARGET_BLOCK_BYTES // bytes_per_row)
    min_rows = max(8, _MIN_BLOCK_BYTES // bytes_per_row)
    # Prefer >= _MIN_GRID_STEPS grid steps (megacore + pipelining) as long as
    # blocks do not drop below ~1 MiB.
    steps_rows = pl.cdiv(slab_rows, _MIN_GRID_STEPS)
    block_rows = min(target_rows, max(min_rows, steps_rows))
    block_rows = (block_rows // 8) * 8               # (8,128) sublane constraint
    if block_rows >= slab_rows:
        return slab_rows                             # full dim -> always legal
    return block_rows


def y_quantize(image, factor=1.0, rounding="round", exact_div=False):
    """JPEG quantization for the Y channel.

    image: (..., 8, 8) float array (e.g. batch x n_blocks x 8 x 8).
    factor: compression factor (static scalar or traced jnp scalar).
    rounding: "round" (torch.round) or "diff" (DiffJPEG diff_round).
    exact_div: use the literal divide (bit-parity with PyTorch) instead of the
      precomputed-reciprocal multiply (default, ~1 ULP pre-round difference).
    Returns an array of the same shape, float32.
    """
    # TODO(synk): arbitrary user-supplied Python rounding callables are not
    # translatable; only "round" and "diff" are implemented.
    if rounding not in ("round", "diff"):
        raise ValueError(f"unsupported rounding mode: {rounding!r}")

    image = jnp.asarray(image, jnp.float32)
    orig_shape = image.shape
    assert orig_shape[-2:] == (8, 8), "trailing dims must be the 8x8 DCT block"
    n_elems = int(np.prod(orig_shape))               # always a multiple of 64

    lane = _pick_lane(n_elems)
    slab_rows = n_elems // lane
    x2d = image.reshape(slab_rows, lane)             # free: contiguous reshape

    block_rows = _pick_block_rows(slab_rows, lane)
    grid = (pl.cdiv(slab_rows, block_rows),)         # partial last block masked;
                                                      # safe: mul/div by positive
                                                      # constant + round on garbage.

    # Precompute the (reciprocal) divisor table once at trace time: hoists the
    # table*factor multiply, the reciprocal, and their broadcast out of the
    # kernel's hot loop.
    tiled = np.tile(_Y_TABLE_NP.reshape(-1), lane // 64)        # (lane,) f32
    if isinstance(factor, (int, float, np.integer, np.floating)):
        denom = (tiled * np.float32(factor)).astype(np.float32)
        q_np = denom if exact_div else (np.float32(1.0) / denom).astype(np.float32)
        q = jnp.asarray(q_np.reshape(1, lane))
    else:
        # Traced factor (e.g. per-call quality under jit): build with jnp.
        denom = jnp.asarray(tiled) * jnp.asarray(factor, jnp.float32)
        q = (denom if exact_div else 1.0 / denom).reshape(1, lane).astype(jnp.float32)

    kernel = functools.partial(_y_quantize_kernel,
                               rounding=rounding, exact_div=exact_div)

    out2d = pl.pallas_call(
        kernel,
        out_shape=jax.ShapeDtypeStruct((slab_rows, lane), jnp.float32),
        grid=grid,
        in_specs=[
            pl.BlockSpec((block_rows, lane), lambda i: (i, 0)),
            pl.BlockSpec((1, lane), lambda i: (0, 0)),   # resident, DMA'd once
        ],
        out_specs=pl.BlockSpec((block_rows, lane), lambda i: (i, 0)),
        compiler_params=pltpu.CompilerParams(
            dimension_semantics=("parallel",),
            vmem_limit_bytes=_VMEM_LIMIT_BYTES),
    )(x2d, q)

    return out2d.reshape(orig_shape)


def _reference(x, factor=1.0, rounding="round", use_reciprocal=True):
    """Pure-JAX mirror of the PyTorch forward (optionally with the same
    precomputed-reciprocal formulation as the fast kernel path)."""
    table = jnp.asarray(_Y_TABLE_NP, jnp.float32)
    x = jnp.asarray(x, jnp.float32)
    denom = table * jnp.float32(factor)
    scaled = x * (1.0 / denom) if use_reciprocal else x / denom
    r = jnp.round(scaled)
    if rounding == "diff":
        d = scaled - r
        r = r + d * d * d
    return r


if __name__ == "__main__":
    key = jax.random.PRNGKey(0)
    # batch=2, 4 DCT blocks per image (e.g. a 16x16 Y plane), 8x8 coefficients.
    x = jax.random.normal(key, (2, 4, 8, 8), dtype=jnp.float32) * 255.0

    # Fast path (default): reciprocal multiply, checked against the same math.
    out = jax.block_until_ready(y_quantize(x, factor=1.0, rounding="round"))
    ref = _reference(x, factor=1.0, rounding="round", use_reciprocal=True)
    np.testing.assert_allclose(np.asarray(out), np.asarray(ref),
                               rtol=0.0, atol=1e-6)
    assert out.shape == x.shape and out.dtype == jnp.float32

    # Exact-divide path: bit-parity with the PyTorch forward's divide.
    out_exact = jax.block_until_ready(
        y_quantize(x, factor=1.0, rounding="round", exact_div=True))
    ref_exact = _reference(x, factor=1.0, rounding="round", use_reciprocal=False)
    np.testing.assert_allclose(np.asarray(out_exact), np.asarray(ref_exact),
                               rtol=0.0, atol=1e-6)

    # Second case: odd block count (exercises the multiple-of-64 lane scan,
    # lane=960 instead of the old half-masked 64), non-unit factor, and the
    # differentiable rounding path.
    x2 = jax.random.normal(jax.random.PRNGKey(1), (3, 5, 8, 8),
                           dtype=jnp.float32) * 255.0
    out2 = jax.block_until_ready(y_quantize(x2, factor=2.0, rounding="diff"))
    ref2 = _reference(x2, factor=2.0, rounding="diff", use_reciprocal=True)
    np.testing.assert_allclose(np.asarray(out2), np.asarray(ref2),
                               rtol=0.0, atol=1e-5)

    print("KERNEL_OK")
</pallas_src>

<mosaic_0001>
module attributes {stable_mosaic.version = 11 : i64} {
  func.func @_y_quantize_kernel(%arg0: i32, %arg1: memref<1x512xf32, #tpu.memory_space<vmem>>, %arg2: memref<1x512xf32, #tpu.memory_space<vmem>>, %arg3: memref<1x512xf32, #tpu.memory_space<vmem>>) attributes {dimension_semantics = [#tpu.dimension_semantics<parallel>], iteration_bounds = array<i64: 1>, scalar_prefetch = 0 : i64, scratch_operands = 0 : i64, tpu.core_type = #tpu.core_type<tc>, window_params = [{transform_indices = @transform_0, window_bounds = array<i64: 1, 512>}, {pipeline_mode = #tpu.pipeline_mode<synchronous>, transform_indices = @transform_1, window_bounds = array<i64: 1, 512>}, {transform_indices = @transform_2, window_bounds = array<i64: 1, 512>}]} {
    %c0 = arith.constant 0 : index
    %c0_0 = arith.constant 0 : index
    %0 = vector.load %arg1[%c0, %c0_0] : memref<1x512xf32, #tpu.memory_space<vmem>>, vector<1x512xf32>
    %c0_1 = arith.constant 0 : index
    %c0_2 = arith.constant 0 : index
    %1 = vector.load %arg2[%c0_1, %c0_2] : memref<1x512xf32, #tpu.memory_space<vmem>>, vector<1x512xf32>
    %2 = arith.mulf %0, %1 : vector<1x512xf32>
    %3 = math.roundeven %2 : vector<1x512xf32>
    %c0_3 = arith.constant 0 : index
    %c0_4 = arith.constant 0 : index
    %4 = vector.load %arg3[%c0_3, %c0_4] : memref<1x512xf32, #tpu.memory_space<vmem>>, vector<1x512xf32>
    tpu.vector_store %arg3[%c0_3, %c0_4], %3 {strides = array<i32>} : memref<1x512xf32, #tpu.memory_space<vmem>>, vector<1x512xf32>,
    return
  }
  func.func @transform_0(%arg0: i32) -> (i32, i32) {
    %c0_i32 = arith.constant 0 : i32
    %c0_i32_0 = arith.constant 0 : i32
    return %arg0, %c0_i32 : i32, i32
  }
  func.func @transform_1(%arg0: i32) -> (i32, i32) {
    %c0_i32 = arith.constant 0 : i32
    %c0_i32_0 = arith.constant 0 : i32
    %c0_i32_1 = arith.constant 0 : i32
    return %c0_i32, %c0_i32_0 : i32, i32
  }
  func.func @transform_2(%arg0: i32) -> (i32, i32) {
    %c0_i32 = arith.constant 0 : i32
    %c0_i32_0 = arith.constant 0 : i32
    return %arg0, %c0_i32 : i32, i32
  }
}

</mosaic_0001>

<llo_original>
// kernel: tpu_custom_call.1
$region0: #{tpu_custom_call.1}
  #allocation0 [shape = 'u32[]', space=smem, size = 0x4, offset = 0x4, fixed_abs, tag = 'smem constant byte address 0x4 - core index']
  #allocation1 [shape = 'u32[144,128]{1,0:T(1,128)}', space=vmem, size = 0x12000, scoped, tag = 'internal scratch']
  %s0 = inlined_call_operand.hbm [shape: f32[1,512], index: 0, kind: input, shape index: {}]
  %s1 = inlined_call_operand.hbm [shape: f32[1,512], index: 1, kind: input, shape index: {}]
  %s2 = inlined_call_operand.hbm [shape: f32[1,512], index: 2, kind: output, shape index: {}]
  %s3 = sld [smem:[#allocation0]]
  $region26: #{tpu_custom_call.1} parent=0
    _
  %s5 = ssub.s32 1, %s3
  %s6 = scalar_select 0, %s5, %s3
  $region1: #{tpu_custom_call.1} parent=0
    #allocation2 [shape = 'u8[2048]{0}', space=vmem, size = 0x800, scoped, tag = 'input window, operand 0, single buffered']
    #allocation3 [shape = 's32[1]{0}', space=sflag, size = 0x4, scoped, tag = 'scoped memory for tpu_custom_call.1']
    #allocation4 [shape = 's32[1]{0}', space=sflag, size = 0x4, scoped, tag = 'scoped memory for tpu_custom_call.1']
    #allocation5 [shape = 'u8[2048]{0}', space=vmem, size = 0x800, scoped, tag = 'input window, operand 1, single buffered']
    #allocation6 [shape = 's32[1]{0}', space=sflag, size = 0x4, scoped, tag = 'scoped memory for tpu_custom_call.1']
    #allocation7 [shape = 'u8[2048]{0}', space=vmem, size = 0x800, scoped, tag = 'output window, operand 0, single buffered']
    %7 = vsyncpa [#allocation3], 0
    %8 = vsyncpa [#allocation6], 0
    %9 = vsyncpa [#allocation4], 0
    // Predicated region
    $region2: #{tpu_custom_call.1} parent=1 // pred_check
      _
    $region3: #{tpu_custom_call.1} parent=1 // pred_check_branch
      %11 = sbr.rel (0) target = $region5
    $region4: #{tpu_custom_call.1} parent=1 // pred_region
      %s13 = ssub.s32 64, 64
      %14 = vsyncadd [#allocation3], %s13
      %s16 = sshll.u32 [#allocation2], 4
      %s17 = int_to_ptr.vmem [resolvable:$true] %s16
      %19 = dma.hbm_to_vmem [thread:$0]  %s0, 64, %s17, [#allocation3]
    $region5: #{tpu_custom_call.1} parent=1 // pred_fallthru
      _
    // Predicated region
    $region6: #{tpu_custom_call.1} parent=1 // pred_check
      _
    $region7: #{tpu_custom_call.1} parent=1 // pred_check_branch
      %21 = sbr.rel (0) target = $region9
    $region8: #{tpu_custom_call.1} parent=1 // pred_region
      %s23 = ssub.s32 64, 64
      %24 = vsyncadd [#allocation6], %s23
      %s26 = sshll.u32 [#allocation5], 4
      %s27 = int_to_ptr.vmem [resolvable:$true] %s26
      %29 = dma.hbm_to_vmem [thread:$0]  %s1, 64, %s27, [#allocation6]
    $region9: #{tpu_custom_call.1} parent=1 // pred_fallthru
      _
    // Predicated region
    $region10: #{tpu_custom_call.1} parent=1 // pred_check
      _
    $region11: #{tpu_custom_call.1} parent=1 // pred_check_branch
      %31 = sbr.rel (0) target = $region13
    $region12: #{tpu_custom_call.1} parent=1 // pred_region
      %32 = dma.done [#allocation3], 64
    $region13: #{tpu_custom_call.1} parent=1 // pred_fallthru
      _
    // Predicated region
    $region14: #{tpu_custom_call.1} parent=1 // pred_check
      _
    $region15: #{tpu_custom_call.1} parent=1 // pred_check_branch
      %34 = sbr.rel (0) target = $region17
    $region16: #{tpu_custom_call.1} parent=1 // pred_region
      %35 = dma.done [#allocation6], 64
    $region17: #{tpu_custom_call.1} parent=1 // pred_fallthru
      _
    %v36 = vld [vmem:[#allocation2] sm:$0xf]
    %v37 = vld [vmem:[#allocation5] sm:$0xf]
    %v38 = vmul.f32 %v36, %v37
    %v39 = vround.ne.pseudo %v38
    %v40 = vlaneseq
    %vm41 = vcmp.ge.s32.totalorder %v40, 0
    %vm42 = vcmp.lt.s32.totalorder %v40, 512
    %vm43 = vmand %vm41, %vm42
    %44 = vst.msk [vmem:[#allocation7] sm:$0xf] %vm43, %v39
    // Predicated region
    $region18: #{tpu_custom_call.1} parent=1 // pred_check
      _
    $region19: #{tpu_custom_call.1} parent=1 // pred_check_branch
      %46 = sbr.rel (0) target = $region21
    $region20: #{tpu_custom_call.1} parent=1 // pred_region
      %s48 = ssub.s32 64, 64
      %49 = vsyncadd [#allocation4], %s48
      %s51 = sshll.u32 [#allocation7], 4
      %s52 = int_to_ptr.vmem [resolvable:$true] %s51
      %54 = dma.vmem_to_hbm [thread:$0]  %s52, 64, %s2, [#allocation4]
    $region21: #{tpu_custom_call.1} parent=1 // pred_fallthru
      _
    // Predicated region
    $region22: #{tpu_custom_call.1} parent=1 // pred_check
      _
    $region23: #{tpu_custom_call.1} parent=1 // pred_check_branch
      %56 = sbr.rel (0) target = $region25
    $region24: #{tpu_custom_call.1} parent=1 // pred_region
      %57 = dma.done [#allocation4], 64
    $region25: #{tpu_custom_call.1} parent=1 // pred_fallthru
      _
    %58 = vsyncpa [#allocation3], 1
    %59 = vsyncpa [#allocation6], 1
    %60 = vsyncpa [#allocation4], 1

</llo_original>
